<compile_context>
chip_gen: v6e
topology: v6e:2x2x1
jax: 0.10.0
libtpu: 0.0.40
codegen_flags: <defaults>
</compile_context>

<pallas_src>
import jax
import jax.numpy as jnp
from jax.experimental import pallas as pl
from jax.experimental.pallas import tpu as pltpu


def _fake_image_discriminator_kernel(w_step_ref,   # SMEM (n_col,) f32, scalar-prefetched
                                     img_ref,      # VMEM (b_tile, col_tile), image dtype
                                     sent_ref,     # VMEM (b_tile, T*E), sentence dtype
                                     w_sent_ref,   # VMEM (1, T*E) f32, folded sentence weights
                                     out_ref,      # VMEM (b_tile, 1) f32
                                     acc_ref):     # VMEM scratch (b_tile, 128) f32
    j = pl.program_id(1)

    @pl.when(j == 0)
    def _init():
        acc_ref[...] = jnp.zeros_like(acc_ref)

    # --- image branch (streamed): weighted channel/spatial accumulation -----
    # Each column block lies inside a single channel, so its folded weight is
    # the scalar w_step_ref[j].  Reduce the block to a lane-dense (b_tile, 128)
    # partial with VALU adds only (no per-step cross-lane XLU reduce); the one
    # cross-lane reduction happens in the finalize.
    n_grp = img_ref.shape[1] // 128                       # static (col_tile % 128 == 0)
    part = img_ref[:, 0:128].astype(jnp.float32)
    for g in range(1, n_grp):                             # static unroll (n_grp <= 256)
        part = part + img_ref[:, g * 128:(g + 1) * 128].astype(jnp.float32)
    acc_ref[...] += w_step_ref[j] * part

    # --- finalize: cross-lane reduce + sentence branch + sigmoid head -------
    @pl.when(j == pl.num_programs(1) - 1)
    def _finalize():
        img_logit = jnp.sum(acc_ref[...], axis=1, keepdims=True)            # (b_tile, 1)
        sent = sent_ref[...].astype(jnp.float32)                            # (b_tile, T*E)
        sent_logit = jnp.sum(sent * w_sent_ref[...], axis=1, keepdims=True)  # (b_tile, 1)
        out_ref[...] = jax.nn.sigmoid(img_logit + sent_logit)


def _largest_b_tile(B):
    """Multiple-of-8 divisor of B giving >= 2 batch tiles whenever possible.

    >= 2 tiles feeds both TensorCores on v7x via the 'parallel' batch axis.
    For B % 8 != 0 (or B <= 8) we fall back to a single full-batch tile; with
    the (B, C*HW) layout this only costs megacore parallelism, not lane width.
    """
    if B <= 8 or B % 8 != 0:
        return B
    best = 8
    for cand in range(8, min(B // 2, 128) + 1, 8):
        if B % cand == 0:
            best = cand
    return best


def _largest_col_tile(hw_cols, b_tile, itemsize, max_block_bytes, max_lane_tile):
    """Largest multiple-of-128 divisor of hw_cols (the padded per-channel
    spatial span) that keeps the image block within the byte budget and the
    in-kernel unroll cap.  hw_cols is always a multiple of 128, so at least
    128 is available; the caller hard-asserts the final budget."""
    budget_lanes = max_block_bytes // (b_tile * itemsize)
    cap = min(hw_cols, budget_lanes, max_lane_tile)
    best = 128
    for cand in range(128, cap + 1, 128):
        if hw_cols % cand == 0:
            best = cand
    return best


def fake_image_discriminator(image, sentence, params, *, b_tile=None,
                             col_tile=None,
                             max_block_bytes=6 * 1024 * 1024,
                             vmem_limit_bytes=32 * 1024 * 1024,
                             max_lane_tile=32 * 1024):
    """image: (B, C, H, W) NCHW; sentence: (B, T, E). Returns (B,) sigmoid scores."""
    w_img, w_sent, w_head = params
    B, C, H, W = image.shape
    _, T, E = sentence.shape
    F = w_img.shape[1]
    HW = H * W

    # ---- head folding (tiny, f32, done once) --------------------------------
    # pooled_img @ w_img @ w_head[:F] == sum_c (sum_hw image[b,c,hw]) * v_img[c]
    # (1/HW and 1/T mean-pool scales folded in as well).
    w_head_f32 = w_head.astype(jnp.float32)[:, 0]                     # (F+S,)
    v_img = (w_img.astype(jnp.float32) @ w_head_f32[:F]) / HW          # (C,)
    v_sent = (w_sent.astype(jnp.float32) @ w_head_f32[F:]) / T         # (E,)

    # ---- image laid out as (B, C*HW): one row per sample, lane axis streams
    #      the channel-major pixels.  Pad the per-channel spatial span to a
    #      multiple of 128 only when needed (padded zero pixels contribute 0).
    if HW % 128 == 0:
        hw_pad = HW
        img2d = image.reshape(B, C * HW)                               # free reshape
    else:
        # TODO(synk): this pad is one extra HBM copy; only hit when H*W is not
        # a multiple of 128.
        hw_pad = ((HW + 127) // 128) * 128
        img2d = jnp.pad(image.reshape(B, C, HW),
                        ((0, 0), (0, 0), (0, hw_pad - HW))).reshape(B, C * hw_pad)

    sent2d = sentence.reshape(B, T * E)                                # free reshape
    itemsize = img2d.dtype.itemsize

    # ---- tiling -------------------------------------------------------------
    if b_tile is None:
        b_tile = _largest_b_tile(B)
    assert B % b_tile == 0 and (b_tile % 8 == 0 or b_tile == B)
    nb = B // b_tile

    if col_tile is None:
        col_tile = _largest_col_tile(hw_pad, b_tile, itemsize,
                                     max_block_bytes, max_lane_tile)
    assert hw_pad % col_tile == 0 and col_tile % 128 == 0

    # Hard budget checks (never silently exceed VMEM the way the old picker
    # could): image block x2 buffers + sentence block x2 + scratch must fit the
    # requested scoped-VMEM limit on every generation (v7x: 64 MiB physical).
    img_block_bytes = b_tile * col_tile * itemsize
    sent_block_bytes = b_tile * T * E * sent2d.dtype.itemsize
    assert img_block_bytes <= max_block_bytes, (
        f"image block is {img_block_bytes} B > max_block_bytes={max_block_bytes}; "
        "raise max_block_bytes/vmem_limit_bytes or use a smaller b_tile")
    assert 2 * (img_block_bytes + sent_block_bytes) + 512 * 1024 <= vmem_limit_bytes, (
        "block choices do not fit the scoped VMEM limit")

    n_col = (C * hw_pad) // col_tile                 # trailing reduction axis

    # Per-column-block folded image weights (scalar per grid step, lives in
    # SMEM via scalar prefetch): block j lies inside channel j // (hw_pad//col_tile).
    w_step = jnp.repeat(v_img, hw_pad // col_tile)                     # (n_col,) f32
    # Folded sentence weights: flattened (T, E) position t*E + e -> v_sent[e].
    w_sent_row = jnp.tile(v_sent, T).reshape(1, T * E)                 # (1, T*E) f32

    grid_spec = pltpu.PrefetchScalarGridSpec(
        num_scalar_prefetch=1,
        grid=(nb, n_col),                            # reduction axis last
        in_specs=[
            pl.BlockSpec((b_tile, col_tile), lambda i, j, w: (i, j)),  # image (streamed)
            pl.BlockSpec((b_tile, T * E), lambda i, j, w: (i, 0)),     # sentence
            pl.BlockSpec((1, T * E), lambda i, j, w: (0, 0)),          # folded sent weights
        ],
        out_specs=pl.BlockSpec((b_tile, 1), lambda i, j, w: (i, 0)),   # (B, 1) column
        scratch_shapes=[pltpu.VMEM((b_tile, 128), jnp.float32)],       # lane-dense acc
    )

    cost = pl.CostEstimate(
        flops=2 * B * C * hw_pad + 2 * B * T * E,
        transcendentals=B,
        bytes_accessed=(img2d.size * itemsize
                        + sent2d.size * sent2d.dtype.itemsize
                        + (w_step.size + w_sent_row.size + B) * 4),
    )

    out = pl.pallas_call(
        _fake_image_discriminator_kernel,
        out_shape=jax.ShapeDtypeStruct((B, 1), jnp.float32),
        grid_spec=grid_spec,
        compiler_params=pltpu.CompilerParams(
            dimension_semantics=("parallel", "arbitrary"),
            vmem_limit_bytes=vmem_limit_bytes),
        cost_estimate=cost,
    )(w_step, img2d, sent2d, w_sent_row)

    # Matches: output.view(-1, 1).squeeze(1)
    return out[:, 0]


def _reference(image, sentence, params):
    """Pure-JAX reference of the same (stand-in) forward pass."""
    w_img, w_sent, w_head = params
    B, C, H, W = image.shape
    F = w_img.shape[1]
    pooled = jnp.mean(image.astype(jnp.float32).reshape(B, C, H * W), axis=2)
    img_feat = pooled @ w_img.astype(jnp.float32)
    sent_pool = jnp.mean(sentence.astype(jnp.float32), axis=1)
    sent_emb = sent_pool @ w_sent.astype(jnp.float32)
    feat = jnp.concatenate([img_feat, sent_emb], axis=1)
    logits = feat @ w_head.astype(jnp.float32)
    return jax.nn.sigmoid(logits)[:, 0]


if __name__ == "__main__":
    # Small, module-consistent shape sets exercising: default tiling, forced
    # multi-step accumulation, >= 2 parallel batch tiles, and the HW%128 pad path.
    configs = [
        dict(B=2, C=4, H=16, W=16, T=8, E=32, F=32, S=32,
             img_dtype=jnp.bfloat16, kwargs={}),                  # default tiling
        dict(B=2, C=4, H=16, W=16, T=8, E=32, F=32, S=32,
             img_dtype=jnp.bfloat16, kwargs=dict(col_tile=128)),  # more reduction steps
        dict(B=16, C=3, H=16, W=16, T=8, E=32, F=32, S=32,
             img_dtype=jnp.float32, kwargs={}),                   # nb=2 parallel batch tiles
        dict(B=2, C=4, H=10, W=10, T=8, E=32, F=32, S=32,
             img_dtype=jnp.bfloat16, kwargs={}),                  # HW % 128 != 0 pad path
    ]

    key = jax.random.PRNGKey(0)
    for cfg in configs:
        B, C, H, W = cfg["B"], cfg["C"], cfg["H"], cfg["W"]
        T, E, F, S = cfg["T"], cfg["E"], cfg["F"], cfg["S"]
        key, k_img, k_sent, k_wi, k_ws, k_wh = jax.random.split(key, 6)

        image = jax.random.normal(k_img, (B, C, H, W), jnp.float32).astype(cfg["img_dtype"])
        sentence = jax.random.normal(k_sent, (B, T, E), jnp.float32).astype(jnp.bfloat16)

        # Deterministic synthetic parameters (no checkpoint load).
        w_img = 0.1 * jax.random.normal(k_wi, (C, F), dtype=jnp.float32)
        w_sent = 0.1 * jax.random.normal(k_ws, (E, S), dtype=jnp.float32)
        w_head = 0.1 * jax.random.normal(k_wh, (F + S, 1), dtype=jnp.float32)
        params = (w_img, w_sent, w_head)

        out = fake_image_discriminator(image, sentence, params, **cfg["kwargs"])
        out = jax.block_until_ready(out)
        ref = _reference(image, sentence, params)

        assert out.shape == (B,), out.shape
        assert bool(jnp.all((out >= 0.0) & (out <= 1.0)))
        assert bool(jnp.allclose(out, ref, atol=1e-4, rtol=1e-4)), (cfg, out, ref)

    print("KERNEL_OK")
</pallas_src>

<mosaic_0001>
module attributes {stable_mosaic.version = 11 : i64} {
  func.func @_fake_image_discriminator_kernel(%arg0: i32, %arg1: i32, %arg2: memref<4xf32, #tpu.memory_space<smem>>, %arg3: memref<2x256xbf16, #tpu.memory_space<vmem>>, %arg4: memref<2x256xbf16, #tpu.memory_space<vmem>>, %arg5: memref<1x256xf32, #tpu.memory_space<vmem>>, %arg6: memref<2x1xf32, #tpu.memory_space<vmem>>, %arg7: memref<2x128xf32, #tpu.memory_space<vmem>>) attributes {dimension_semantics = [#tpu.dimension_semantics<parallel>, #tpu.dimension_semantics<arbitrary>], iteration_bounds = array<i64: 1, 4>, scalar_prefetch = 1 : i64, scratch_operands = 1 : i64, tpu.core_type = #tpu.core_type<tc>, window_params = [{transform_indices = @transform_0, window_bounds = array<i64: 2, 256>}, {transform_indices = @transform_1, window_bounds = array<i64: 2, 256>}, {pipeline_mode = #tpu.pipeline_mode<synchronous>, transform_indices = @transform_2, window_bounds = array<i64: 1, 256>}, {transform_indices = @transform_3, window_bounds = array<i64: 2, 1>}]} {
    %c0_i32 = arith.constant 0 : i32
    %0 = arith.cmpi eq, %arg1, %c0_i32 : i32
    %1 = arith.extui %0 : i1 to i32
    %c0_i32_0 = arith.constant 0 : i32
    %2 = arith.cmpi ne, %1, %c0_i32_0 : i32
    scf.if %2 {
      %cst = arith.constant 0.000000e+00 : f32
      %18 = vector.broadcast %cst : f32 to vector<2x128xf32>
      %c0_8 = arith.constant 0 : index
      %c0_9 = arith.constant 0 : index
      %19 = vector.load %arg7[%c0_8, %c0_9] : memref<2x128xf32, #tpu.memory_space<vmem>>, vector<2x128xf32>
      tpu.vector_store %arg7[%c0_8, %c0_9], %18 {strides = array<i32>} : memref<2x128xf32, #tpu.memory_space<vmem>>, vector<2x128xf32>,
    } else {
    }
    %c0 = arith.constant 0 : index
    %c0_1 = arith.constant 0 : index
    %3 = vector.load %arg3[%c0, %c0_1] : memref<2x256xbf16, #tpu.memory_space<vmem>>, vector<2x128xbf16>
    %4 = arith.extf %3 : vector<2x128xbf16> to vector<2x128xf32>
    %c0_2 = arith.constant 0 : index
    %c128 = arith.constant 128 : index
    %5 = vector.load %arg3[%c0_2, %c128] : memref<2x256xbf16, #tpu.memory_space<vmem>>, vector<2x128xbf16>
    %6 = arith.extf %5 : vector<2x128xbf16> to vector<2x128xf32>
    %7 = arith.addf %4, %6 : vector<2x128xf32>
    %c0_3 = arith.constant 0 : index
    %c0_4 = arith.constant 0 : index
    %8 = vector.load %arg7[%c0_3, %c0_4] : memref<2x128xf32, #tpu.memory_space<vmem>>, vector<2x128xf32>
    %9 = arith.index_cast %arg1 : i32 to index
    %10 = memref.load %arg2[%9] : memref<4xf32, #tpu.memory_space<smem>>
    %11 = vector.broadcast %10 : f32 to vector<2x128xf32>
    %12 = arith.mulf %11, %7 : vector<2x128xf32>
    %13 = arith.addf %8, %12 : vector<2x128xf32>
    %c0_5 = arith.constant 0 : index
    %c0_6 = arith.constant 0 : index
    %14 = vector.load %arg7[%c0_5, %c0_6] : memref<2x128xf32, #tpu.memory_space<vmem>>, vector<2x128xf32>
    tpu.vector_store %arg7[%c0_5, %c0_6], %13 {strides = array<i32>} : memref<2x128xf32, #tpu.memory_space<vmem>>, vector<2x128xf32>,
    %c3_i32 = arith.constant 3 : i32
    %15 = arith.cmpi eq, %arg1, %c3_i32 : i32
    %16 = arith.extui %15 : i1 to i32
    %c0_i32_7 = arith.constant 0 : i32
    %17 = arith.cmpi ne, %16, %c0_i32_7 : i32
    scf.if %17 {
      %c0_8 = arith.constant 0 : index
      %c0_9 = arith.constant 0 : index
      %18 = vector.load %arg7[%c0_8, %c0_9] : memref<2x128xf32, #tpu.memory_space<vmem>>, vector<2x128xf32>
      %cst = arith.constant dense<0.000000e+00> : vector<2xf32>
      %19 = vector.multi_reduction <add>, %18, %cst [1] : vector<2x128xf32> to vector<2xf32>
      %20 = vector.shape_cast %19 : vector<2xf32> to vector<2x1xf32>
      %c0_10 = arith.constant 0 : index
      %c0_11 = arith.constant 0 : index
      %21 = vector.load %arg4[%c0_10, %c0_11] : memref<2x256xbf16, #tpu.memory_space<vmem>>, vector<2x256xbf16>
      %22 = arith.extf %21 : vector<2x256xbf16> to vector<2x256xf32>
      %c0_12 = arith.constant 0 : index
      %c0_13 = arith.constant 0 : index
      %23 = vector.load %arg5[%c0_12, %c0_13] : memref<1x256xf32, #tpu.memory_space<vmem>>, vector<1x256xf32>
      %24 = vector.broadcast %23 : vector<1x256xf32> to vector<2x256xf32>
      %25 = arith.mulf %22, %24 : vector<2x256xf32>
      %cst_14 = arith.constant dense<0.000000e+00> : vector<2xf32>
      %26 = vector.multi_reduction <add>, %25, %cst_14 [1] : vector<2x256xf32> to vector<2xf32>
      %27 = vector.shape_cast %26 : vector<2xf32> to vector<2x1xf32>
      %28 = arith.addf %20, %27 : vector<2x1xf32>
      %29 = arith.negf %28 : vector<2x1xf32>
      %30 = math.exp %29 : vector<2x1xf32>
      %cst_15 = arith.constant 1.000000e+00 : f32
      %31 = vector.broadcast %cst_15 : f32 to vector<2x1xf32>
      %32 = arith.addf %31, %30 : vector<2x1xf32>
      %33 = arith.divf %31, %32 : vector<2x1xf32>
      %c0_16 = arith.constant 0 : index
      %c0_17 = arith.constant 0 : index
      %34 = vector.load %arg6[%c0_16, %c0_17] : memref<2x1xf32, #tpu.memory_space<vmem>>, vector<2x1xf32>
      tpu.vector_store %arg6[%c0_16, %c0_17], %33 {strides = array<i32>} : memref<2x1xf32, #tpu.memory_space<vmem>>, vector<2x1xf32>,
    } else {
    }
    return
  }
  func.func @transform_0(%arg0: i32, %arg1: i32, %arg2: memref<4xf32, #tpu.memory_space<smem>>) -> (i32, i32) {
    %c0_i32 = arith.constant 0 : i32
    return %arg0, %arg1 : i32, i32
  }
  func.func @transform_1(%arg0: i32, %arg1: i32, %arg2: memref<4xf32, #tpu.memory_space<smem>>) -> (i32, i32) {
    %c0_i32 = arith.constant 0 : i32
    %c0_i32_0 = arith.constant 0 : i32
    return %arg0, %c0_i32 : i32, i32
  }
  func.func @transform_2(%arg0: i32, %arg1: i32, %arg2: memref<4xf32, #tpu.memory_space<smem>>) -> (i32, i32) {
    %c0_i32 = arith.constant 0 : i32
    %c0_i32_0 = arith.constant 0 : i32
    %c0_i32_1 = arith.constant 0 : i32
    return %c0_i32, %c0_i32_0 : i32, i32
  }
  func.func @transform_3(%arg0: i32, %arg1: i32, %arg2: memref<4xf32, #tpu.memory_space<smem>>) -> (i32, i32) {
    %c0_i32 = arith.constant 0 : i32
    %c0_i32_0 = arith.constant 0 : i32
    return %arg0, %c0_i32 : i32, i32
  }
}

</mosaic_0001>

<llo_original>
// kernel: tpu_custom_call.1
$region0: #{tpu_custom_call.1}
  #allocation0 [shape = 'u32[]', space=smem, size = 0x4, offset = 0x4, fixed_abs, tag = 'smem constant byte address 0x4 - core index']
  #allocation1 [shape = 'u32[144,128]{1,0:T(1,128)}', space=vmem, size = 0x12000, scoped, tag = 'internal scratch']
  #allocation2 [shape = 'f32[2,128]{1,0:T(2,128)}', space=vmem, size = 0x400, scoped, tag = 'scratch operand']
  #allocation3 [shape = 's32[1]{0}', space=sflag, size = 0x4, scoped, tag = 'scoped memory for tpu_custom_call.1']
  #allocation4 [shape = 'u8[512]{0}', space=smem, size = 0x200, scoped, tag = 'prefetched SMEM operand 0']
  %s0 = inlined_call_operand.hbm [shape: f32[4], index: 0, kind: input, shape index: {}]
  %s1 = inlined_call_operand.hbm [shape: bf16[2,1024], index: 1, kind: input, shape index: {}]
  %s2 = inlined_call_operand.vmem [shape: bf16[2,256], index: 2, kind: input, shape index: {}]
  %s3 = inlined_call_operand.vmem [shape: f32[1,256], index: 3, kind: input, shape index: {}]
  %s4 = inlined_call_operand.vmem [shape: f32[2,1], index: 4, kind: output, shape index: {}]
  %s5 = sld [smem:[#allocation0]]
  $region57: #{tpu_custom_call.1} parent=0
    _
  %s7 = ssub.s32 1, %s5
  %s8 = scalar_select 0, %s7, %s5
  %10 = dma.hbm_to_smem %s0, 16, [#allocation4], [#allocation3]
  %11 = dma.done [#allocation3], 16
  %12 = sfence
  $region1: #{tpu_custom_call.1} parent=0
    #allocation5 [shape = 'u8[2048]{0}', space=vmem, size = 0x800, scoped, tag = 'input window, operand 1']
    #allocation6 [shape = 's32[2]{0}', space=sflag, size = 0x8, scoped, tag = 'scoped memory for tpu_custom_call.1']
    %13 = vsyncpa [#allocation6], 0
    %s14 = scalar_lea.sflag [#allocation6], 1
    %15 = vsyncpa %s14, 0
    loop: start=0, step=1, limit=6
    $region2: #{tpu_custom_call.1} parent=1 // loop_pre_header
      _
    $region3: #{tpu_custom_call.1} parent=1 // loop_header
      %s17 = sphi 0, %s21
      %p18 = scmp.ge.s32.totalorder %s17, 6
      %s24 = sphi 0, %s36
      %s25 = sphi 0, %s32
      %s26 = sphi 0, %s24
      %s27 = sphi 0, %s25
      %s28 = sphi 0, %s26
      %s29 = sphi 0, %s27
      %s41 = sphi 0, %s43
      %s44 = sphi 0, %s41
      %s45 = sphi 0, %s44
      %s61 = sphi 0, %s45
      %s67 = sphi 0, %s69
      %s70 = sphi 0, %s67
      %s71 = sphi 0, %s70
      %s87 = sphi 0, %s71
      %s91 = sphi 0, %s91
      %s93 = sphi 0, %s91
      %s94 = sphi 0, %s93
      %s108 = sphi 0, %s94
      %s114 = sphi 0, %s116
      %s117 = sphi 0, %s114
      %s118 = sphi 0, %s117
      %s134 = sphi 0, %s118
    $region4: #{tpu_custom_call.1} parent=1 // loop_header_branch
      %20 = sbr.rel (%p18) target = $region8
    $region5: #{tpu_custom_call.1} parent=1 // loop_body
      %s22 = ssub.s32 %s17, 1
      %s23 = ssub.s32 %s17, 2
      %s30 = sadd.s32 1, %s25
      %p31 = scmp.ge.s32.totalorder %s30, 4
      %s32 = scalar_select %p31, 0, %s30
      %s33 = sadd.s32 1, %s24
      %s34 = scalar_select %p31, %s33, %s24
      %p35 = scmp.ge.s32.totalorder %s34, 1
      %s36 = scalar_select %p35, 0, %s34
      %s37 = ssub.s32 %s24, %s36
      %s38 = ssub.s32 %s25, %s32
      %s39 = sor.u32 %s37, %s38
      %p40 = scmp.eq.s32.totalorder %s39, 0
      %s42 = sadd.s32 %s41, 1
      %s43 = scalar_select %p40, %s41, %s42
      %p46 = pneg %p40
      %p47 = scmp.eq.s32.totalorder %s17, 3
      %p48 = por %p46, %p47
      %p49 = scmp.ne.s32.totalorder %s41, %s44
      %p50 = scmp.eq.s32.totalorder %s17, 0
      %p51 = por %p49, %p50
      %p52 = scmp.ne.s32.totalorder %s41, %s44
      %p53 = scmp.eq.s32.totalorder %s22, 3
      %p54 = por %p52, %p53
      %p55 = scmp.ne.s32.totalorder %s44, %s45
      %p56 = scmp.eq.s32.totalorder %s22, 0
      %p57 = por %p55, %p56
      %p58 = scmp.ne.s32.totalorder %s44, %s45
      %p59 = scmp.eq.s32.totalorder %s23, 3
      %p60 = por %p58, %p59
      %p62 = scmp.ne.s32.totalorder %s45, %s61
      %p63 = scmp.eq.s32.totalorder %s23, 0
      %p64 = por %p62, %p63
      %s65 = ssub.s32 %s24, %s36
      %p66 = scmp.eq.s32.totalorder %s65, 0
      %s68 = sadd.s32 %s67, 1
      %s69 = scalar_select %p66, %s67, %s68
      %p72 = pneg %p66
      %p73 = scmp.eq.s32.totalorder %s17, 3
      %p74 = por %p72, %p73
      %p75 = scmp.ne.s32.totalorder %s67, %s70
      %p76 = scmp.eq.s32.totalorder %s17, 0
      %p77 = por %p75, %p76
      %p78 = scmp.ne.s32.totalorder %s67, %s70
      %p79 = scmp.eq.s32.totalorder %s22, 3
      %p80 = por %p78, %p79
      %p81 = scmp.ne.s32.totalorder %s70, %s71
      %p82 = scmp.eq.s32.totalorder %s22, 0
      %p83 = por %p81, %p82
      %p84 = scmp.ne.s32.totalorder %s70, %s71
      %p85 = scmp.eq.s32.totalorder %s23, 3
      %p86 = por %p84, %p85
      %p88 = scmp.ne.s32.totalorder %s71, %s87
      %p89 = scmp.eq.s32.totalorder %s23, 0
      %p90 = por %p88, %p89
      %s92 = sadd.s32 %s91, 1
      %p95 = scmp.eq.s32.totalorder %s17, 3
      %p96 = scmp.ne.s32.totalorder %s91, %s93
      %p97 = scmp.eq.s32.totalorder %s17, 0
      %p98 = por %p96, %p97
      %p99 = scmp.ne.s32.totalorder %s91, %s93
      %p100 = scmp.eq.s32.totalorder %s22, 3
      %p101 = por %p99, %p100
      %p102 = scmp.ne.s32.totalorder %s93, %s94
      %p103 = scmp.eq.s32.totalorder %s22, 0
      %p104 = por %p102, %p103
      %p105 = scmp.ne.s32.totalorder %s93, %s94
      %p106 = scmp.eq.s32.totalorder %s23, 3
      %p107 = por %p105, %p106
      %p109 = scmp.ne.s32.totalorder %s94, %s108
      %p110 = scmp.eq.s32.totalorder %s23, 0
      %p111 = por %p109, %p110
      %s112 = ssub.s32 %s24, %s36
      %p113 = scmp.eq.s32.totalorder %s112, 0
      %s115 = sadd.s32 %s114, 1
      %s116 = scalar_select %p113, %s114, %s115
      %p119 = pneg %p113
      %p120 = scmp.eq.s32.totalorder %s17, 3
      %p121 = por %p119, %p120
      %p122 = scmp.ne.s32.totalorder %s114, %s117
      %p123 = scmp.eq.s32.totalorder %s17, 0
      %p124 = por %p122, %p123
      %p125 = scmp.ne.s32.totalorder %s114, %s117
      %p126 = scmp.eq.s32.totalorder %s22, 3
      %p127 = por %p125, %p126
      %p128 = scmp.ne.s32.totalorder %s117, %s118
      %p129 = scmp.eq.s32.totalorder %s22, 0
      %p130 = por %p128, %p129
      %p131 = scmp.ne.s32.totalorder %s117, %s118
      %p132 = scmp.eq.s32.totalorder %s23, 3
      %p133 = por %p131, %p132
      %p135 = scmp.ne.s32.totalorder %s118, %s134
      %p136 = scmp.eq.s32.totalorder %s23, 0
      %p137 = por %p135, %p136
      %p138 = scmp.le.s32.totalorder 1, %s17
      %p139 = scmp.lt.s32.totalorder %s17, 5
      %p140 = pnand %p138, %p139
      %p141 = pneg %p140
      // Predicated region
      $region9: #{tpu_custom_call.1} parent=5 // pred_check
        _
      $region10: #{tpu_custom_call.1} parent=5 // pred_check_branch
        %143 = sbr.rel (%p140) target = $region12
      $region11: #{tpu_custom_call.1} parent=5 // pred_region
        %s144 = ssub.s32 %s17, 1
        // Predicated region
        $region13: #{tpu_custom_call.1} parent=11 // pred_check
          %p145 = pneg %p83
        $region14: #{tpu_custom_call.1} parent=11 // pred_check_branch
          %147 = sbr.rel (%p145) target = $region16
        $region15: #{tpu_custom_call.1} parent=11 // pred_region
          %p148 = scmp.lt.s32.totalorder %s26, 0
          %s149 = scalar_select %p148, %s26, 0
          %s150 = smul.addr %s149, 2
          %s151 = scalar_lea.vmem %s2, %s150
        $region16: #{tpu_custom_call.1} parent=11 // pred_fallthru
          _
        // Predicated region
        $region17: #{tpu_custom_call.1} parent=11 // pred_check
          %p152 = pneg %p104
        $region18: #{tpu_custom_call.1} parent=11 // pred_check_branch
          %154 = sbr.rel (%p152) target = $region20
        $region19: #{tpu_custom_call.1} parent=11 // pred_region
          _
        $region20: #{tpu_custom_call.1} parent=11 // pred_fallthru
          _
      $region12: #{tpu_custom_call.1} parent=5 // pred_fallthru
        _
      %p155 = scmp.lt.s32.totalorder %s17, 4
      // Predicated region
      $region21: #{tpu_custom_call.1} parent=5 // pred_check
        %p156 = pneg %p155
      $region22: #{tpu_custom_call.1} parent=5 // pred_check_branch
        %158 = sbr.rel (%p156) target = $region24
      $region23: #{tpu_custom_call.1} parent=5 // pred_region
        // Predicated region
        $region25: #{tpu_custom_call.1} parent=23 // pred_check
          %p159 = pneg %p51
        $region26: #{tpu_custom_call.1} parent=23 // pred_check_branch
          %161 = sbr.rel (%p159) target = $region28
        $region27: #{tpu_custom_call.1} parent=23 // pred_region
          %s162 = sand.u32 %s41, 1
          %s163 = scalar_lea.sflag [#allocation6], %s162
          %s164 = sand.u32 %s41, 1
          %s165 = smul.addr %s164, 2
          %s166 = scalar_lea.vmem [#allocation5], %s165
          %s167 = smul.u32 2, %s25
          %s169 = ssub.s32 32, 32
          %170 = vsyncadd %s163, %s169
          %s171 = smul.addr %s24, 8
          %s172 = sadd.s32 %s167, %s171
          %s173 = smul.addr %s172, 16
          %s174 = scalar_lea.hbm %s1, %s173
          %s176 = sshll.u32 %s166, 4
          %s177 = int_to_ptr.vmem [resolvable:$true] %s176
          %179 = dma.hbm_to_vmem [thread:$0]  %s174, 32, %s177, %s163
        $region28: #{tpu_custom_call.1} parent=23 // pred_fallthru
          _
      $region24: #{tpu_custom_call.1} parent=5 // pred_fallthru
        _
      %p180 = scmp.le.s32.totalorder 1, %s17
      %p181 = scmp.lt.s32.totalorder %s17, 5
      %p182 = pnand %p180, %p181
      %p183 = pneg %p182
      // Predicated region
      $region29: #{tpu_custom_call.1} parent=5 // pred_check
        _
      $region30: #{tpu_custom_call.1} parent=5 // pred_check_branch
        %185 = sbr.rel (%p182) target = $region32
      $region31: #{tpu_custom_call.1} parent=5 // pred_region
        %s186 = ssub.s32 %s17, 1
        %s187 = sand.u32 %s44, 1
        %s188 = scalar_lea.sflag [#allocation6], %s187
        %s189 = sand.u32 %s44, 1
        %s190 = smul.addr %s189, 2
        %s191 = scalar_lea.vmem [#allocation5], %s190
        // Predicated region
        $region33: #{tpu_custom_call.1} parent=31 // pred_check
          %p192 = pneg %p57
        $region34: #{tpu_custom_call.1} parent=31 // pred_check_branch
          %194 = sbr.rel (%p192) target = $region36
        $region35: #{tpu_custom_call.1} parent=31 // pred_region
          %195 = dma.done %s188, 32
        $region36: #{tpu_custom_call.1} parent=31 // pred_fallthru
          _
        %s196 = sand.u32 %s44, 1
        %s197 = scalar_lea.sflag [#allocation6], %s196
        %s198 = sand.u32 %s44, 1
        %s199 = smul.addr %s198, 2
        %s200 = scalar_lea.vmem [#allocation5], %s199
        %p201 = pneg %p57
        %p202 = pneg %p54
        %p203 = scmp.lt.s32.totalorder %s26, 0
        %s204 = scalar_select %p203, %s26, 0
        %s205 = smul.addr %s204, 2
        %s206 = scalar_lea.vmem %s2, %s205
        %p207 = pneg %p83
        %p208 = pneg %p80
        %p209 = pneg %p104
        %p210 = pneg %p101
        %p211 = pneg %p130
        %p212 = pneg %p127
        %p213 = scmp.lt.s32.totalorder %s26, 0
        %s214 = scalar_select %p213, %s26, 0
        %s215 = smul.addr %s214, 2
        %s216 = scalar_lea.vmem %s4, %s215
        %s217 = smul.u32 2, %s27
        %p218 = scmp.lt.s32.totalorder %s26, 0
        %s219 = scalar_select %p218, %s26, 0
        %s220 = smul.addr %s219, 2
        %s221 = scalar_lea.vmem %s2, %s220
        %p222 = scmp.lt.s32.totalorder %s26, 0
        %s223 = scalar_select %p222, %s26, 0
        %s224 = smul.addr %s223, 2
        %s225 = scalar_lea.vmem %s4, %s224
        %p226 = scmp.eq.s32.totalorder %s27, 0
        // Predicated region
        $region37: #{tpu_custom_call.1} parent=31 // pred_check
          %p227 = pneg %p226
        $region38: #{tpu_custom_call.1} parent=31 // pred_check_branch
          %229 = sbr.rel (%p227) target = $region40
        $region39: #{tpu_custom_call.1} parent=31 // pred_region
          %230 = vst [vmem:[#allocation2] sm:$0x3] 0.0
        $region40: #{tpu_custom_call.1} parent=31 // pred_fallthru
          _
        %v231 = vld [vmem:[%s191] sm:$0x1]
        %v232 = vunpack.c.l.bf16 %v231
        %v233 = vld [vmem:[%s191 + $0x1] sm:$0x1]
        %v234 = vunpack.c.l.bf16 %v233
        %v235 = vadd.f32 %v232, %v234
        %v236 = vld [vmem:[#allocation2] sm:$0x3]
        %s237 = sld [smem:[#allocation4 + %s27]]
        %v238 = vstv %s237
        %v239 = vmul.f32 %v238, %v235
        %v240 = vadd.f32 %v236, %v239
        %241 = vst [vmem:[#allocation2] sm:$0x3] %v240
        %p242 = scmp.eq.s32.totalorder %s27, 3
        // Predicated region
        $region41: #{tpu_custom_call.1} parent=31 // pred_check
          %p243 = pneg %p242
        $region42: #{tpu_custom_call.1} parent=31 // pred_check_branch
          %245 = sbr.rel (%p243) target = $region44
        $region43: #{tpu_custom_call.1} parent=31 // pred_region
          %v246 = vld [vmem:[#allocation2] sm:$0x3]
          %vm247 = vcmask 1041408
          %v248 = vsel %vm247, %v246, 0.0
          %249 = vadd.xlane.f32.xlu0 %v248
          %v250 = vpop.xlane.xlu0 %249
          %v251 = vld [vmem:[%s221] sm:$0x3]
          %v252 = vunpack.c.l.bf16 %v251
          %v253 = vld [vmem:[%s3] sm:$0x3]
          %v255 = vlaneseq
          %v256 = vshrl.u32 %v255, 7
          %v257 = vsub.s32 0, %v256
          %v258 = vrot.slane %v253, %v257
          %v259 = vlaneseq
          %v260 = vshrl.u32 %v259, 7
          %v261 = vsub.s32 1, %v260
          %v262 = vrot.slane %v253, %v261
          %v263 = vcombine.low %v258, %v262
          %v265 = vunpack.c.l.s4 1983009808
          %v266 = vunpack.c.0.s8 %v265
          %v267 = vlaneseq
          %v268 = vshrl.u32 %v267, 7
          %v269 = vsub.s32 %v266, %v268
          %v270 = vrot.slane %v263, %v269
          %v272 = vmul.f32 %v252, %v270
          %v275 = vunpack.c.l.s4 1983009808
          %v276 = vunpack.c.0.s8 %v275
          %v277 = vlaneseq
          %v278 = vshrl.u32 %v277, 7
          %v279 = vsub.s32 %v276, %v278
          %v280 = vrot.slane %v272, %v279
          %v281 = vcombine.high %v280, %v280
          %v284 = vsel %vm247, %v280, 0.0
          %v285 = vsel %vm247, %v281, 0.0
          %v286 = vadd.f32 %v284, %v285
          %287 = vadd.xlane.f32.xlu0 %v286
          %v288 = vpop.xlane.xlu0 %287
          %v289 = vadd.f32 %v250, %v288
          %v290 = vxor.u32 %v289, 2147483648
          %v291 = vmul.f32 %v290, 1.442695
          %v292 = vpow.pop %v291
          %v293 = vadd.f32 %v292, 1.0
          %v294 = vrcp.pop %v293
          %v295 = vmul.f32 1.0, %v294
          %vm296 = vcmask 1024
          %297 = vst.msk [vmem:[%s225] sm:$0x3] %vm296, %v295
        $region44: #{tpu_custom_call.1} parent=31 // pred_fallthru
          _
        %p298 = scmp.lt.s32.totalorder %s26, 0
        %s299 = scalar_select %p298, %s26, 0
        %s300 = smul.addr %s299, 2
        %s301 = scalar_lea.vmem %s4, %s300
        // Predicated region
        $region45: #{tpu_custom_call.1} parent=31 // pred_check
          %p302 = pneg %p127
        $region46: #{tpu_custom_call.1} parent=31 // pred_check_branch
          %304 = sbr.rel (%p302) target = $region48
        $region47: #{tpu_custom_call.1} parent=31 // pred_region
          _
        $region48: #{tpu_custom_call.1} parent=31 // pred_fallthru
          _
        // Predicated region
        $region49: #{tpu_custom_call.1} parent=31 // pred_check
          %p305 = pneg %p127
        $region50: #{tpu_custom_call.1} parent=31 // pred_check_branch
          %307 = sbr.rel (%p305) target = $region52
        $region51: #{tpu_custom_call.1} parent=31 // pred_region
          %p308 = scmp.lt.s32.totalorder %s26, 0
          %s309 = scalar_select %p308, %s26, 0
          %s310 = smul.addr %s309, 2
          %s311 = scalar_lea.vmem %s4, %s310
        $region52: #{tpu_custom_call.1} parent=31 // pred_fallthru
          _
      $region32: #{tpu_custom_call.1} parent=5 // pred_fallthru
        _
      %p312 = scmp.le.s32.totalorder 2, %s17
      // Predicated region
      $region53: #{tpu_custom_call.1} parent=5 // pred_check
        %p313 = pneg %p312
      $region54: #{tpu_custom_call.1} parent=5 // pred_check_branch
        %315 = sbr.rel (%p313) target = $region56
      $region55: #{tpu_custom_call.1} parent=5 // pred_region
        %s316 = ssub.s32 %s17, 2
      $region56: #{tpu_custom_call.1} parent=5 // pred_fallthru
        _
    $region6: #{tpu_custom_call.1} parent=1 // loop_footer
      %s21 = sadd.s32 1, %s17
    $region7: #{tpu_custom_call.1} parent=1 // loop_footer_branch
      %16 = sbr.rel target = $region3
    $region8: #{tpu_custom_call.1} parent=1 // loop_exit
      _
    %317 = vsyncpa [#allocation6], 1
    %s318 = scalar_lea.sflag [#allocation6], 1
    %319 = vsyncpa %s318, 1

</llo_original>
